<compile_context>
chip_gen: v5e
topology: v5e:2x2
jax: 0.10.0
libtpu: 0.0.40
codegen_flags: <defaults>
</compile_context>

<pallas_src>
import functools

import jax
import jax.numpy as jnp
from jax.experimental import pallas as pl
from jax.experimental.pallas import tpu as pltpu


def _torch_chunk_sizes(C: int, n_parts: int):
    """Replicate torch.chunk size semantics along a dim of length C."""
    chunk = -(-C // n_parts)  # ceil division
    sizes = []
    rem = C
    while rem > 0:
        s = min(chunk, rem)
        sizes.append(s)
        rem -= s
    return sizes


def _pick_hw_tile(HW: int) -> int:
    """Largest 128-multiple tile (<=2048) that divides HW, else the full HW."""
    if HW % 128 == 0:
        for cand in (2048, 1024, 512, 256, 128):
            if HW % cand == 0:
                return cand
    return HW  # full extent satisfies the (8,128)/full-dim BlockSpec rule.


def _fused_chunk_kernel(x_ref, *o_refs, offsets, sizes):
    # x_ref block: (1, C, HW_TILE); o_refs[k] block: (1, sizes[k], HW_TILE).
    # Static channel slices -> plain VMEM tile copies, lane-dense on the last
    # (spatial) axis.
    for o_ref, off, csize in zip(o_refs, offsets, sizes):
        o_ref[...] = x_ref[:, off:off + csize, :]


def chunk_chans_forward(x: jax.Array, n_parts: int):
    """Pallas implementation of ChunkChans.forward.

    Args:
      x: NCHW array, shape (N, C, H, W).
      n_parts: number of channel chunks requested.

    Returns:
      (tuple_of_chunks, 0) matching torch.chunk(x, n_parts, dim=1).
    """
    N, C, H, W = x.shape
    HW = H * W
    x_flat = x.reshape(N, C, HW)

    sizes = _torch_chunk_sizes(C, n_parts)
    offsets = []
    off = 0
    for s in sizes:
        offsets.append(off)
        off += s

    hw_tile = _pick_hw_tile(HW)
    grid = (N, HW // hw_tile)

    kernel = functools.partial(
        _fused_chunk_kernel, offsets=tuple(offsets), sizes=tuple(sizes)
    )

    out_shapes = tuple(
        jax.ShapeDtypeStruct((N, s, HW), x.dtype) for s in sizes
    )
    out_specs = tuple(
        pl.BlockSpec((1, s, hw_tile), lambda n, t: (n, 0, t)) for s in sizes
    )

    outs = pl.pallas_call(
        kernel,
        out_shape=out_shapes,
        grid=grid,
        in_specs=[pl.BlockSpec((1, C, hw_tile), lambda n, t: (n, 0, t))],
        out_specs=out_specs,
        compiler_params=pltpu.CompilerParams(
            dimension_semantics=("parallel", "parallel")
        ),
    )(x_flat)

    chunks = tuple(o.reshape(N, s, H, W) for o, s in zip(outs, sizes))
    return chunks, 0


def chunk_chans_invert(ys, n_parts: int):
    """Inverse: concatenate along channel dim."""
    # TODO(synk): concat left in plain JAX; it is pure layout glue.
    return jnp.concatenate(ys, axis=1), 0


if __name__ == "__main__":
    key = jax.random.PRNGKey(0)
    key_a, key_b = jax.random.split(key)

    def reference_chunks(x, n_parts):
        sizes = _torch_chunk_sizes(x.shape[1], n_parts)
        refs, off = [], 0
        for s in sizes:
            refs.append(x[:, off:off + s, :, :])
            off += s
        return refs

    # Case 1: even split (typical module use), N=2, C=4, H=W=16, n_parts=2.
    N, C, H, W = 2, 4, 16, 16
    n_parts = 2
    x = jax.random.normal(key_a, (N, C, H, W), dtype=jnp.float32)

    chunks, logdet = chunk_chans_forward(x, n_parts)
    chunks = jax.block_until_ready(chunks)

    assert logdet == 0
    refs = reference_chunks(x, n_parts)
    assert len(chunks) == len(refs)
    for got, ref in zip(chunks, refs):
        assert got.shape == ref.shape, (got.shape, ref.shape)
        assert jnp.array_equal(got, ref), "chunk mismatch"

    y, _ = chunk_chans_invert(chunks, n_parts)
    y = jax.block_until_ready(y)
    assert jnp.array_equal(y, x), "invert round-trip mismatch"

    # Case 2: uneven split with a smaller last chunk (torch.chunk semantics).
    x2 = jax.random.normal(key_b, (2, 5, 16, 16), dtype=jnp.float32)
    chunks2, logdet2 = chunk_chans_forward(x2, n_parts=3)  # sizes [2, 2, 1]
    chunks2 = jax.block_until_ready(chunks2)
    assert logdet2 == 0
    for got, ref in zip(chunks2, reference_chunks(x2, 3)):
        assert got.shape == ref.shape, (got.shape, ref.shape)
        assert jnp.array_equal(got, ref), "uneven chunk mismatch"
    y2, _ = chunk_chans_invert(chunks2, 3)
    assert jnp.array_equal(jax.block_until_ready(y2), x2)

    print("KERNEL_OK")
</pallas_src>

<mosaic_0001>
module attributes {stable_mosaic.version = 11 : i64} {
  func.func @_fused_chunk_kernel(%arg0: i32, %arg1: i32, %arg2: memref<1x4x256xf32, #tpu.memory_space<vmem>>, %arg3: memref<1x2x256xf32, #tpu.memory_space<vmem>>, %arg4: memref<1x2x256xf32, #tpu.memory_space<vmem>>) attributes {dimension_semantics = [#tpu.dimension_semantics<parallel>, #tpu.dimension_semantics<parallel>], iteration_bounds = array<i64: 2, 1>, scalar_prefetch = 0 : i64, scratch_operands = 0 : i64, tpu.core_type = #tpu.core_type<tc>, window_params = [{transform_indices = @transform_0, window_bounds = array<i64: 1, 4, 256>}, {transform_indices = @transform_1, window_bounds = array<i64: 1, 2, 256>}, {transform_indices = @transform_2, window_bounds = array<i64: 1, 2, 256>}]} {
    %c0 = arith.constant 0 : index
    %c0_0 = arith.constant 0 : index
    %c0_1 = arith.constant 0 : index
    %0 = vector.load %arg2[%c0, %c0_0, %c0_1] : memref<1x4x256xf32, #tpu.memory_space<vmem>>, vector<1x2x256xf32>
    %c0_2 = arith.constant 0 : index
    %c0_3 = arith.constant 0 : index
    %c0_4 = arith.constant 0 : index
    %1 = vector.load %arg3[%c0_2, %c0_3, %c0_4] : memref<1x2x256xf32, #tpu.memory_space<vmem>>, vector<1x2x256xf32>
    tpu.vector_store %arg3[%c0_2, %c0_3, %c0_4], %0 {strides = array<i32>} : memref<1x2x256xf32, #tpu.memory_space<vmem>>, vector<1x2x256xf32>,
    %c0_5 = arith.constant 0 : index
    %c2 = arith.constant 2 : index
    %c0_6 = arith.constant 0 : index
    %2 = vector.load %arg2[%c0_5, %c2, %c0_6] : memref<1x4x256xf32, #tpu.memory_space<vmem>>, vector<1x2x256xf32>
    %c0_7 = arith.constant 0 : index
    %c0_8 = arith.constant 0 : index
    %c0_9 = arith.constant 0 : index
    %3 = vector.load %arg4[%c0_7, %c0_8, %c0_9] : memref<1x2x256xf32, #tpu.memory_space<vmem>>, vector<1x2x256xf32>
    tpu.vector_store %arg4[%c0_7, %c0_8, %c0_9], %2 {strides = array<i32>} : memref<1x2x256xf32, #tpu.memory_space<vmem>>, vector<1x2x256xf32>,
    return
  }
  func.func @transform_0(%arg0: i32, %arg1: i32) -> (i32, i32, i32) {
    %c0_i32 = arith.constant 0 : i32
    %c0_i32_0 = arith.constant 0 : i32
    return %arg0, %c0_i32, %arg1 : i32, i32, i32
  }
  func.func @transform_1(%arg0: i32, %arg1: i32) -> (i32, i32, i32) {
    %c0_i32 = arith.constant 0 : i32
    %c0_i32_0 = arith.constant 0 : i32
    return %arg0, %c0_i32, %arg1 : i32, i32, i32
  }
  func.func @transform_2(%arg0: i32, %arg1: i32) -> (i32, i32, i32) {
    %c0_i32 = arith.constant 0 : i32
    %c0_i32_0 = arith.constant 0 : i32
    return %arg0, %c0_i32, %arg1 : i32, i32, i32
  }
}

</mosaic_0001>

<llo_original>
// kernel: tpu_custom_call.1
$region0: #{tpu_custom_call.1}
  #allocation0 [shape = 'u32[]', space=smem, size = 0x4, offset = 0x4, fixed_abs, tag = 'smem constant byte address 0x4 - core index']
  #allocation1 [shape = 'u32[72,128]{1,0:T(1,128)}', space=vmem, size = 0x9000, scoped, tag = 'internal scratch']
  %s0 = inlined_call_operand.hbm [shape: f32[2,4,256], index: 0, kind: input, shape index: {}]
  %s1 = inlined_call_operand.hbm [shape: f32[2,2,256], index: 1, kind: output, shape index: {0}]
  %s2 = inlined_call_operand.hbm [shape: f32[2,2,256], index: 2, kind: output, shape index: {1}]
  %3 = xla_tuple %s1, %s2
  %s4 = sld [smem:[#allocation0]]
  $region49: #{tpu_custom_call.1} parent=0
    _
  %s6 = ssub.s32 1, %s4
  %s7 = scalar_select 0, %s6, %s4
  $region1: #{tpu_custom_call.1} parent=0
    #allocation2 [shape = 'u8[8192]{0}', space=vmem, size = 0x2000, scoped, tag = 'input window, operand 0']
    #allocation3 [shape = 's32[2]{0}', space=sflag, size = 0x8, scoped, tag = 'scoped memory for tpu_custom_call.1']
    #allocation4 [shape = 's32[2]{0}', space=sflag, size = 0x8, scoped, tag = 'scoped memory for tpu_custom_call.1']
    #allocation5 [shape = 'u8[4096]{0}', space=vmem, size = 0x1000, scoped, tag = 'output window, operand 0']
    #allocation6 [shape = 'u8[4096]{0}', space=vmem, size = 0x1000, scoped, tag = 'output window, operand 1']
    #allocation7 [shape = 's32[2]{0}', space=sflag, size = 0x8, scoped, tag = 'scoped memory for tpu_custom_call.1']
    %8 = vsyncpa [#allocation3], 0
    %s9 = scalar_lea.sflag [#allocation3], 1
    %10 = vsyncpa %s9, 0
    %11 = vsyncpa [#allocation4], 0
    %s12 = scalar_lea.sflag [#allocation4], 1
    %13 = vsyncpa %s12, 0
    %14 = vsyncpa [#allocation7], 0
    %s15 = scalar_lea.sflag [#allocation7], 1
    %16 = vsyncpa %s15, 0
    loop: start=0, step=1, limit=4
    $region2: #{tpu_custom_call.1} parent=1 // loop_pre_header
      _
    $region3: #{tpu_custom_call.1} parent=1 // loop_header
      %s18 = sphi 0, %s22
      %p19 = scmp.ge.s32.totalorder %s18, 4
      %s25 = sphi 0, %s37
      %s26 = sphi 0, %s33
      %s27 = sphi 0, %s25
      %s28 = sphi 0, %s26
      %s29 = sphi 0, %s27
      %s30 = sphi 0, %s28
      %s42 = sphi 0, %s44
      %s45 = sphi 0, %s42
      %s46 = sphi 0, %s45
      %s62 = sphi 0, %s46
      %s70 = sphi 0, %s72
      %s73 = sphi 0, %s70
      %s74 = sphi 0, %s73
      %s90 = sphi 0, %s74
      %s98 = sphi 0, %s100
      %s101 = sphi 0, %s98
      %s102 = sphi 0, %s101
      %s118 = sphi 0, %s102
    $region4: #{tpu_custom_call.1} parent=1 // loop_header_branch
      %21 = sbr.rel (%p19) target = $region8
    $region5: #{tpu_custom_call.1} parent=1 // loop_body
      %s23 = ssub.s32 %s18, 1
      %s24 = ssub.s32 %s18, 2
      %s31 = sadd.s32 1, %s26
      %p32 = scmp.ge.s32.totalorder %s31, 1
      %s33 = scalar_select %p32, 0, %s31
      %s34 = sadd.s32 1, %s25
      %s35 = scalar_select %p32, %s34, %s25
      %p36 = scmp.ge.s32.totalorder %s35, 2
      %s37 = scalar_select %p36, 0, %s35
      %s38 = ssub.s32 %s25, %s37
      %s39 = ssub.s32 %s26, %s33
      %s40 = sor.u32 %s38, %s39
      %p41 = scmp.eq.s32.totalorder %s40, 0
      %s43 = sadd.s32 %s42, 1
      %s44 = scalar_select %p41, %s42, %s43
      %p47 = pneg %p41
      %p48 = scmp.eq.s32.totalorder %s18, 1
      %p49 = por %p47, %p48
      %p50 = scmp.ne.s32.totalorder %s42, %s45
      %p51 = scmp.eq.s32.totalorder %s18, 0
      %p52 = por %p50, %p51
      %p53 = scmp.ne.s32.totalorder %s42, %s45
      %p54 = scmp.eq.s32.totalorder %s23, 1
      %p55 = por %p53, %p54
      %p56 = scmp.ne.s32.totalorder %s45, %s46
      %p57 = scmp.eq.s32.totalorder %s23, 0
      %p58 = por %p56, %p57
      %p59 = scmp.ne.s32.totalorder %s45, %s46
      %p60 = scmp.eq.s32.totalorder %s24, 1
      %p61 = por %p59, %p60
      %p63 = scmp.ne.s32.totalorder %s46, %s62
      %p64 = scmp.eq.s32.totalorder %s24, 0
      %p65 = por %p63, %p64
      %s66 = ssub.s32 %s25, %s37
      %s67 = ssub.s32 %s26, %s33
      %s68 = sor.u32 %s66, %s67
      %p69 = scmp.eq.s32.totalorder %s68, 0
      %s71 = sadd.s32 %s70, 1
      %s72 = scalar_select %p69, %s70, %s71
      %p75 = pneg %p69
      %p76 = scmp.eq.s32.totalorder %s18, 1
      %p77 = por %p75, %p76
      %p78 = scmp.ne.s32.totalorder %s70, %s73
      %p79 = scmp.eq.s32.totalorder %s18, 0
      %p80 = por %p78, %p79
      %p81 = scmp.ne.s32.totalorder %s70, %s73
      %p82 = scmp.eq.s32.totalorder %s23, 1
      %p83 = por %p81, %p82
      %p84 = scmp.ne.s32.totalorder %s73, %s74
      %p85 = scmp.eq.s32.totalorder %s23, 0
      %p86 = por %p84, %p85
      %p87 = scmp.ne.s32.totalorder %s73, %s74
      %p88 = scmp.eq.s32.totalorder %s24, 1
      %p89 = por %p87, %p88
      %p91 = scmp.ne.s32.totalorder %s74, %s90
      %p92 = scmp.eq.s32.totalorder %s24, 0
      %p93 = por %p91, %p92
      %s94 = ssub.s32 %s25, %s37
      %s95 = ssub.s32 %s26, %s33
      %s96 = sor.u32 %s94, %s95
      %p97 = scmp.eq.s32.totalorder %s96, 0
      %s99 = sadd.s32 %s98, 1
      %s100 = scalar_select %p97, %s98, %s99
      %p103 = pneg %p97
      %p104 = scmp.eq.s32.totalorder %s18, 1
      %p105 = por %p103, %p104
      %p106 = scmp.ne.s32.totalorder %s98, %s101
      %p107 = scmp.eq.s32.totalorder %s18, 0
      %p108 = por %p106, %p107
      %p109 = scmp.ne.s32.totalorder %s98, %s101
      %p110 = scmp.eq.s32.totalorder %s23, 1
      %p111 = por %p109, %p110
      %p112 = scmp.ne.s32.totalorder %s101, %s102
      %p113 = scmp.eq.s32.totalorder %s23, 0
      %p114 = por %p112, %p113
      %p115 = scmp.ne.s32.totalorder %s101, %s102
      %p116 = scmp.eq.s32.totalorder %s24, 1
      %p117 = por %p115, %p116
      %p119 = scmp.ne.s32.totalorder %s102, %s118
      %p120 = scmp.eq.s32.totalorder %s24, 0
      %p121 = por %p119, %p120
      %p122 = scmp.le.s32.totalorder 1, %s18
      %p123 = scmp.lt.s32.totalorder %s18, 3
      %p124 = pnand %p122, %p123
      %p125 = pneg %p124
      // Predicated region
      $region9: #{tpu_custom_call.1} parent=5 // pred_check
        _
      $region10: #{tpu_custom_call.1} parent=5 // pred_check_branch
        %127 = sbr.rel (%p124) target = $region12
      $region11: #{tpu_custom_call.1} parent=5 // pred_region
        %s128 = ssub.s32 %s18, 1
      $region12: #{tpu_custom_call.1} parent=5 // pred_fallthru
        _
      %p129 = scmp.lt.s32.totalorder %s18, 2
      // Predicated region
      $region13: #{tpu_custom_call.1} parent=5 // pred_check
        %p130 = pneg %p129
      $region14: #{tpu_custom_call.1} parent=5 // pred_check_branch
        %132 = sbr.rel (%p130) target = $region16
      $region15: #{tpu_custom_call.1} parent=5 // pred_region
        // Predicated region
        $region17: #{tpu_custom_call.1} parent=15 // pred_check
          %p133 = pneg %p52
        $region18: #{tpu_custom_call.1} parent=15 // pred_check_branch
          %135 = sbr.rel (%p133) target = $region20
        $region19: #{tpu_custom_call.1} parent=15 // pred_region
          %s136 = sand.u32 %s42, 1
          %s137 = scalar_lea.sflag [#allocation3], %s136
          %s138 = sand.u32 %s42, 1
          %s139 = smul.addr %s138, 8
          %s140 = scalar_lea.vmem [#allocation2], %s139
          %s141 = smul.u32 2, %s26
          %143 = vsyncadd %s137, 0
          %s144 = smul.addr %s25, 2
          %s145 = sadd.s32 %s141, %s144
          %s146 = smul.addr %s145, 4
          %s147 = scalar_lea.hbm %s0, %s146
          %s149 = sshll.u32 %s147, 4
          %s150 = int_to_ptr.hbm [resolvable:$true] %s149
          %s151 = sshll.u32 %s140, 4
          %s152 = int_to_ptr.vmem [resolvable:$true] %s151
          %154 = dma.hbm_to_vmem [thread:$0]  %s150, 128, %s152, %s137
        $region20: #{tpu_custom_call.1} parent=15 // pred_fallthru
          _
      $region16: #{tpu_custom_call.1} parent=5 // pred_fallthru
        _
      %p155 = scmp.le.s32.totalorder 1, %s18
      %p156 = scmp.lt.s32.totalorder %s18, 3
      %p157 = pnand %p155, %p156
      %p158 = pneg %p157
      // Predicated region
      $region21: #{tpu_custom_call.1} parent=5 // pred_check
        _
      $region22: #{tpu_custom_call.1} parent=5 // pred_check_branch
        %160 = sbr.rel (%p157) target = $region24
      $region23: #{tpu_custom_call.1} parent=5 // pred_region
        %s161 = ssub.s32 %s18, 1
        %s162 = sand.u32 %s45, 1
        %s163 = scalar_lea.sflag [#allocation3], %s162
        %s164 = sand.u32 %s45, 1
        %s165 = smul.addr %s164, 8
        %s166 = scalar_lea.vmem [#allocation2], %s165
        // Predicated region
        $region25: #{tpu_custom_call.1} parent=23 // pred_check
          %p167 = pneg %p58
        $region26: #{tpu_custom_call.1} parent=23 // pred_check_branch
          %169 = sbr.rel (%p167) target = $region28
        $region27: #{tpu_custom_call.1} parent=23 // pred_region
          %171 = dma.done %s163, 128
        $region28: #{tpu_custom_call.1} parent=23 // pred_fallthru
          _
        %s172 = sand.u32 %s45, 1
        %s173 = scalar_lea.sflag [#allocation3], %s172
        %s174 = sand.u32 %s45, 1
        %s175 = smul.addr %s174, 8
        %s176 = scalar_lea.vmem [#allocation2], %s175
        %p177 = pneg %p58
        %p178 = pneg %p55
        %p179 = pneg %p86
        %p180 = pneg %p83
        %s181 = sand.u32 %s73, 1
        %s182 = scalar_lea.sflag [#allocation4], %s181
        %s183 = sand.u32 %s73, 1
        %s184 = smul.addr %s183, 4
        %s185 = scalar_lea.vmem [#allocation5], %s184
        %p186 = pneg %p114
        %p187 = pneg %p111
        %s188 = sand.u32 %s101, 1
        %s189 = scalar_lea.sflag [#allocation7], %s188
        %s190 = sand.u32 %s101, 1
        %s191 = smul.addr %s190, 4
        %s192 = scalar_lea.vmem [#allocation6], %s191
        %s193 = smul.u32 2, %s28
        %s194 = smul.u32 2, %s28
        %s195 = smul.u32 2, %s28
        %v196 = vld [vmem:[%s166] sm:$0x33]
        %v198 = vrot.slane %v196, 2
        %vm199 = vcmask 1041408
        %v200 = vsel %vm199, %v196, %v198
        %202 = vst [vmem:[%s185] sm:$0xf] %v200
        %v203 = vld [vmem:[%s166] sm:$0xcc]
        %205 = vst.sshfl [vmem:[#allocation1] sm:$0xff pattern:$0x75643120] %v203
        %s206 = scalar_lea.vmem [#allocation1], 1
        %v207 = vld [vmem:[%s206] ss:$2 sm:$0xff]
        %209 = vst [vmem:[%s192] sm:$0xf] %v207
        %s210 = sand.u32 %s73, 1
        %s211 = scalar_lea.sflag [#allocation4], %s210
        %s212 = sand.u32 %s73, 1
        %s213 = smul.addr %s212, 4
        %s214 = scalar_lea.vmem [#allocation5], %s213
        %s215 = sand.u32 %s101, 1
        %s216 = scalar_lea.sflag [#allocation7], %s215
        %s217 = sand.u32 %s101, 1
        %s218 = smul.addr %s217, 4
        %s219 = scalar_lea.vmem [#allocation6], %s218
        // Predicated region
        $region29: #{tpu_custom_call.1} parent=23 // pred_check
          %p220 = pneg %p83
        $region30: #{tpu_custom_call.1} parent=23 // pred_check_branch
          %222 = sbr.rel (%p220) target = $region32
        $region31: #{tpu_custom_call.1} parent=23 // pred_region
          %s223 = smul.u32 2, %s28
          %225 = vsyncadd %s211, 0
          %s226 = smul.addr %s27, 2
          %s227 = sadd.s32 %s223, %s226
          %s228 = smul.addr %s227, 2
          %s229 = scalar_lea.hbm %s1, %s228
          %s231 = sshll.u32 %s214, 4
          %s232 = int_to_ptr.vmem [resolvable:$true] %s231
          %s233 = sshll.u32 %s229, 4
          %s234 = int_to_ptr.hbm [resolvable:$true] %s233
          %236 = dma.vmem_to_hbm [thread:$0]  %s232, 64, %s234, %s211
        $region32: #{tpu_custom_call.1} parent=23 // pred_fallthru
          _
        // Predicated region
        $region33: #{tpu_custom_call.1} parent=23 // pred_check
          %p237 = pneg %p111
        $region34: #{tpu_custom_call.1} parent=23 // pred_check_branch
          %239 = sbr.rel (%p237) target = $region36
        $region35: #{tpu_custom_call.1} parent=23 // pred_region
          %s240 = smul.u32 2, %s28
          %242 = vsyncadd %s216, 0
          %s243 = smul.addr %s27, 2
          %s244 = sadd.s32 %s240, %s243
          %s245 = smul.addr %s244, 2
          %s246 = scalar_lea.hbm %s2, %s245
          %s248 = sshll.u32 %s219, 4
          %s249 = int_to_ptr.vmem [resolvable:$true] %s248
          %s250 = sshll.u32 %s246, 4
          %s251 = int_to_ptr.hbm [resolvable:$true] %s250
          %253 = dma.vmem_to_hbm [thread:$0]  %s249, 64, %s251, %s216
        $region36: #{tpu_custom_call.1} parent=23 // pred_fallthru
          _
      $region24: #{tpu_custom_call.1} parent=5 // pred_fallthru
        _
      %p254 = scmp.le.s32.totalorder 2, %s18
      // Predicated region
      $region37: #{tpu_custom_call.1} parent=5 // pred_check
        %p255 = pneg %p254
      $region38: #{tpu_custom_call.1} parent=5 // pred_check_branch
        %257 = sbr.rel (%p255) target = $region40
      $region39: #{tpu_custom_call.1} parent=5 // pred_region
        %s258 = ssub.s32 %s18, 2
        // Predicated region
        $region41: #{tpu_custom_call.1} parent=39 // pred_check
          %p259 = pneg %p89
        $region42: #{tpu_custom_call.1} parent=39 // pred_check_branch
          %261 = sbr.rel (%p259) target = $region44
        $region43: #{tpu_custom_call.1} parent=39 // pred_region
          %s262 = sand.u32 %s74, 1
          %s263 = scalar_lea.sflag [#allocation4], %s262
          %s264 = sand.u32 %s74, 1
          %s265 = smul.addr %s264, 4
          %s266 = scalar_lea.vmem [#allocation5], %s265
          %268 = dma.done %s263, 64
        $region44: #{tpu_custom_call.1} parent=39 // pred_fallthru
          _
        // Predicated region
        $region45: #{tpu_custom_call.1} parent=39 // pred_check
          %p269 = pneg %p117
        $region46: #{tpu_custom_call.1} parent=39 // pred_check_branch
          %271 = sbr.rel (%p269) target = $region48
        $region47: #{tpu_custom_call.1} parent=39 // pred_region
          %s272 = sand.u32 %s102, 1
          %s273 = scalar_lea.sflag [#allocation7], %s272
          %s274 = sand.u32 %s102, 1
          %s275 = smul.addr %s274, 4
          %s276 = scalar_lea.vmem [#allocation6], %s275
          %278 = dma.done %s273, 64
        $region48: #{tpu_custom_call.1} parent=39 // pred_fallthru
          _
      $region40: #{tpu_custom_call.1} parent=5 // pred_fallthru
        _
    $region6: #{tpu_custom_call.1} parent=1 // loop_footer
      %s22 = sadd.s32 1, %s18
    $region7: #{tpu_custom_call.1} parent=1 // loop_footer_branch
      %17 = sbr.rel target = $region3
    $region8: #{tpu_custom_call.1} parent=1 // loop_exit
      _
    %279 = vsyncpa [#allocation3], 1
    %s280 = scalar_lea.sflag [#allocation3], 1
    %281 = vsyncpa %s280, 1
    %282 = vsyncpa [#allocation4], 1
    %s283 = scalar_lea.sflag [#allocation4], 1
    %284 = vsyncpa %s283, 1
    %285 = vsyncpa [#allocation7], 1
    %s286 = scalar_lea.sflag [#allocation7], 1
    %287 = vsyncpa %s286, 1

</llo_original>
